<compile_context>
chip_gen: v6e
topology: v6e:2x2x1
jax: 0.10.0
libtpu: 0.0.40
codegen_flags: <defaults>
</compile_context>

<pallas_src>
import jax
import jax.numpy as jnp
import numpy as np
from jax.experimental import pallas as pl
from jax.experimental.pallas import tpu as pltpu


def _sigmoid(z):
    return 1.0 / (1.0 + jnp.exp(-z))


def _gc_kernel(x_ref, wk_ref, bk_ref, w1t_ref, b1_ref, w2t_ref, b2_ref, o_ref):
    # x_ref  : (BB, C, L)  batch tile
    # wk_ref : (C, 1)      to_k 1x1 conv weight
    # bk_ref : (1, 1)      to_k bias (softmax-invariant, kept for fidelity)
    # w1t_ref: (C, H), b1_ref: (1, H)   net[0] (1x1 conv), weight pre-transposed
    # w2t_ref: (H, D), b2_ref: (1, D)   net[2] (1x1 conv), weight pre-transposed
    # o_ref  : (BB, D)
    x = x_ref[...].astype(jnp.float32)                             # (BB, C, L)

    # to_k 1x1 conv: k[b, l] = sum_c wk[c] * x[b, c, l] + bk  (VPU mul + sublane reduce)
    k = jnp.sum(x * wk_ref[...], axis=1) + bk_ref[...]             # (BB, L)

    # numerically stable softmax over L (lane reduces)
    m = jnp.max(k, axis=-1, keepdims=True)
    e = jnp.exp(k - m)
    attn = e / jnp.sum(e, axis=-1, keepdims=True)                  # (BB, L)

    # attention pooling: pooled[b, c] = sum_l attn[b, l] * x[b, c, l]
    pooled = jnp.sum(x * attn[:, None, :], axis=-1)                # (BB, C)

    # excitation MLP (1x1 convs on a length-1 signal): SiLU then Sigmoid,
    # row-batched so the batch rides the sublane axis and D is lane-dense.
    h = jnp.dot(pooled, w1t_ref[...],
                preferred_element_type=jnp.float32) + b1_ref[...]  # (BB, H)
    h = h * _sigmoid(h)                                            # SiLU
    o = jnp.dot(h, w2t_ref[...],
                preferred_element_type=jnp.float32) + b2_ref[...]  # (BB, D)
    o_ref[...] = _sigmoid(o).astype(o_ref.dtype)


def global_context(x, params):
    """x: (B, C, L). Returns sigmoid gate of shape (B, dim_out, 1)."""
    B, C, L = x.shape
    wk = params["wk"].reshape(C, 1)           # (1, C, 1) -> (C, 1)
    bk = params["bk"].reshape(1, 1)           # (1,)      -> (1, 1)
    w1t = params["w1"][:, :, 0].T             # (H, C, 1) -> (C, H)
    b1 = params["b1"].reshape(1, -1)          # (H,)      -> (1, H)
    w2t = params["w2"][:, :, 0].T             # (D, H, 1) -> (H, D)
    b2 = params["b2"].reshape(1, -1)          # (D,)      -> (1, D)
    H = w1t.shape[1]
    D = w2t.shape[1]

    # Batch tile: sublane-aligned (<=8), and keep the x tile well under VMEM.
    bytes_per_row = C * L * 4
    bb_budget = max(1, (8 << 20) // max(1, bytes_per_row))
    BB = max(1, min(B, 8, bb_budget))
    grid = (pl.cdiv(B, BB),)

    out2d = pl.pallas_call(
        _gc_kernel,
        out_shape=jax.ShapeDtypeStruct((B, D), x.dtype),
        grid=grid,
        in_specs=[
            pl.BlockSpec((BB, C, L), lambda n: (n, 0, 0)),  # x (only per-step DMA)
            pl.BlockSpec((C, 1), lambda n: (0, 0)),          # wk (resident)
            pl.BlockSpec((1, 1), lambda n: (0, 0)),          # bk
            pl.BlockSpec((C, H), lambda n: (0, 0)),          # w1^T
            pl.BlockSpec((1, H), lambda n: (0, 0)),          # b1
            pl.BlockSpec((H, D), lambda n: (0, 0)),          # w2^T
            pl.BlockSpec((1, D), lambda n: (0, 0)),          # b2
        ],
        out_specs=pl.BlockSpec((BB, D), lambda n: (n, 0)),   # lane-dense store
        compiler_params=pltpu.CompilerParams(
            dimension_semantics=("parallel",)),
    )(x, wk, bk, w1t, b1, w2t, b2)

    return out2d[:, :, None]                                 # (B, D, 1)


# --------------------------- pure-JAX reference ------------------------------

def _ref_global_context(x, params):
    wk = params["wk"][:, :, 0]                                   # (1, C)
    bk = params["bk"]                                            # (1,)
    w1 = params["w1"][:, :, 0]                                   # (H, C)
    b1 = params["b1"]                                            # (H,)
    w2 = params["w2"][:, :, 0]                                   # (D, H)
    b2 = params["b2"]                                            # (D,)
    k = jnp.einsum("oc,bcl->bol", wk, x) + bk[None, :, None]     # (B, 1, L)
    attn = jax.nn.softmax(k, axis=-1)
    pooled = jnp.einsum("bil,bcl->bci", attn, x)                 # (B, C, 1)
    h = jnp.einsum("hc,bci->bhi", w1, pooled) + b1[None, :, None]
    h = jax.nn.silu(h)
    o = jnp.einsum("dh,bhi->bdi", w2, h) + b2[None, :, None]
    return jax.nn.sigmoid(o)                                     # (B, D, 1)


if __name__ == "__main__":
    key = jax.random.PRNGKey(0)
    ks = jax.random.split(key, 7)

    B, C, L = 2, 4, 16             # batch, dim_in, sequence length
    dim_out = 8
    hidden = max(3, dim_out // 2)  # = 4

    x = jax.random.normal(ks[0], (B, C, L), dtype=jnp.float32)

    def conv1x1_init(kw, kb, out_ch, in_ch):
        # PyTorch Conv1d default init: U(-1/sqrt(fan_in), 1/sqrt(fan_in))
        bound = 1.0 / np.sqrt(in_ch)
        w = jax.random.uniform(kw, (out_ch, in_ch, 1), jnp.float32, -bound, bound)
        b = jax.random.uniform(kb, (out_ch,), jnp.float32, -bound, bound)
        return w, b

    wk, bk = conv1x1_init(ks[1], ks[2], 1, C)             # to_k
    w1, b1 = conv1x1_init(ks[3], ks[4], hidden, C)        # net[0]
    w2, b2 = conv1x1_init(ks[5], ks[6], dim_out, hidden)  # net[2]
    params = {"wk": wk, "bk": bk, "w1": w1, "b1": b1, "w2": w2, "b2": b2}

    y = jax.block_until_ready(global_context(x, params))
    y_ref = _ref_global_context(x, params)

    assert y.shape == (B, dim_out, 1), y.shape
    np.testing.assert_allclose(np.asarray(y), np.asarray(y_ref),
                               rtol=1e-5, atol=1e-5)

    print("KERNEL_OK")
</pallas_src>

<mosaic_0001>
module attributes {stable_mosaic.version = 11 : i64} {
  func.func @_gc_kernel(%arg0: i32, %arg1: memref<2x4x16xf32, #tpu.memory_space<vmem>>, %arg2: memref<4x1xf32, #tpu.memory_space<vmem>>, %arg3: memref<1x1xf32, #tpu.memory_space<vmem>>, %arg4: memref<4x4xf32, #tpu.memory_space<vmem>>, %arg5: memref<1x4xf32, #tpu.memory_space<vmem>>, %arg6: memref<4x8xf32, #tpu.memory_space<vmem>>, %arg7: memref<1x8xf32, #tpu.memory_space<vmem>>, %arg8: memref<2x8xf32, #tpu.memory_space<vmem>>) attributes {dimension_semantics = [#tpu.dimension_semantics<parallel>], iteration_bounds = array<i64: 1>, scalar_prefetch = 0 : i64, scratch_operands = 0 : i64, tpu.core_type = #tpu.core_type<tc>, window_params = [{transform_indices = @transform_0, window_bounds = array<i64: 2, 4, 16>}, {pipeline_mode = #tpu.pipeline_mode<synchronous>, transform_indices = @transform_1, window_bounds = array<i64: 4, 1>}, {pipeline_mode = #tpu.pipeline_mode<synchronous>, transform_indices = @transform_2, window_bounds = array<i64: 1, 1>}, {pipeline_mode = #tpu.pipeline_mode<synchronous>, transform_indices = @transform_3, window_bounds = array<i64: 4, 4>}, {pipeline_mode = #tpu.pipeline_mode<synchronous>, transform_indices = @transform_4, window_bounds = array<i64: 1, 4>}, {pipeline_mode = #tpu.pipeline_mode<synchronous>, transform_indices = @transform_5, window_bounds = array<i64: 4, 8>}, {pipeline_mode = #tpu.pipeline_mode<synchronous>, transform_indices = @transform_6, window_bounds = array<i64: 1, 8>}, {transform_indices = @transform_7, window_bounds = array<i64: 2, 8>}]} {
    %c0 = arith.constant 0 : index
    %c0_0 = arith.constant 0 : index
    %c0_1 = arith.constant 0 : index
    %0 = vector.load %arg1[%c0, %c0_0, %c0_1] : memref<2x4x16xf32, #tpu.memory_space<vmem>>, vector<2x4x16xf32>
    %c0_2 = arith.constant 0 : index
    %c0_3 = arith.constant 0 : index
    %1 = vector.load %arg2[%c0_2, %c0_3] : memref<4x1xf32, #tpu.memory_space<vmem>>, vector<4x1xf32>
    %2 = vector.shape_cast %1 : vector<4x1xf32> to vector<1x4x1xf32>
    %3 = vector.broadcast %2 : vector<1x4x1xf32> to vector<2x4x16xf32>
    %4 = arith.mulf %0, %3 : vector<2x4x16xf32>
    %cst = arith.constant dense<0.000000e+00> : vector<2x16xf32>
    %5 = vector.multi_reduction <add>, %4, %cst [1] : vector<2x4x16xf32> to vector<2x16xf32>
    %c0_4 = arith.constant 0 : index
    %c0_5 = arith.constant 0 : index
    %6 = vector.load %arg3[%c0_4, %c0_5] : memref<1x1xf32, #tpu.memory_space<vmem>>, vector<1x1xf32>
    %7 = vector.broadcast %6 : vector<1x1xf32> to vector<2x16xf32>
    %8 = arith.addf %5, %7 : vector<2x16xf32>
    %cst_6 = arith.constant dense<0xFF800000> : vector<2xf32>
    %9 = vector.multi_reduction <maximumf>, %8, %cst_6 [1] : vector<2x16xf32> to vector<2xf32>
    %10 = vector.shape_cast %9 : vector<2xf32> to vector<2x1xf32>
    %11 = vector.broadcast %10 : vector<2x1xf32> to vector<2x16xf32>
    %12 = arith.subf %8, %11 : vector<2x16xf32>
    %13 = math.exp %12 : vector<2x16xf32>
    %cst_7 = arith.constant dense<0.000000e+00> : vector<2xf32>
    %14 = vector.multi_reduction <add>, %13, %cst_7 [1] : vector<2x16xf32> to vector<2xf32>
    %15 = vector.shape_cast %14 : vector<2xf32> to vector<2x1xf32>
    %16 = vector.broadcast %15 : vector<2x1xf32> to vector<2x16xf32>
    %17 = arith.divf %13, %16 : vector<2x16xf32>
    %18 = vector.shape_cast %17 : vector<2x16xf32> to vector<2x1x16xf32>
    %19 = vector.broadcast %18 : vector<2x1x16xf32> to vector<2x4x16xf32>
    %20 = arith.mulf %0, %19 : vector<2x4x16xf32>
    %cst_8 = arith.constant dense<0.000000e+00> : vector<2x4xf32>
    %21 = vector.multi_reduction <add>, %20, %cst_8 [2] : vector<2x4x16xf32> to vector<2x4xf32>
    %c0_9 = arith.constant 0 : index
    %c0_10 = arith.constant 0 : index
    %22 = vector.load %arg4[%c0_9, %c0_10] : memref<4x4xf32, #tpu.memory_space<vmem>>, vector<4x4xf32>
    %cst_11 = arith.constant dense<0.000000e+00> : vector<2x4xf32>
    %23 = tpu.matmul %21, %22, %cst_11 {dimension_numbers = #tpu.dot_dimension_numbers<[1], [0], [0], [1], [0, 0, 1, 1], [], []>} : vector<2x4xf32>, vector<4x4xf32>, vector<2x4xf32> -> vector<2x4xf32>
    %c0_12 = arith.constant 0 : index
    %c0_13 = arith.constant 0 : index
    %24 = vector.load %arg5[%c0_12, %c0_13] : memref<1x4xf32, #tpu.memory_space<vmem>>, vector<1x4xf32>
    %25 = vector.broadcast %24 : vector<1x4xf32> to vector<2x4xf32>
    %26 = arith.addf %23, %25 : vector<2x4xf32>
    %cst_14 = arith.constant 0.000000e+00 : f32
    %27 = vector.broadcast %cst_14 : f32 to vector<2x4xf32>
    %28 = arith.subf %27, %26 : vector<2x4xf32>
    %29 = math.exp %28 : vector<2x4xf32>
    %cst_15 = arith.constant 1.000000e+00 : f32
    %30 = vector.broadcast %cst_15 : f32 to vector<2x4xf32>
    %31 = arith.addf %30, %29 : vector<2x4xf32>
    %cst_16 = arith.constant 1.000000e+00 : f32
    %32 = vector.broadcast %cst_16 : f32 to vector<2x4xf32>
    %33 = arith.divf %32, %31 : vector<2x4xf32>
    %34 = arith.mulf %26, %33 : vector<2x4xf32>
    %c0_17 = arith.constant 0 : index
    %c0_18 = arith.constant 0 : index
    %35 = vector.load %arg6[%c0_17, %c0_18] : memref<4x8xf32, #tpu.memory_space<vmem>>, vector<4x8xf32>
    %cst_19 = arith.constant dense<0.000000e+00> : vector<2x8xf32>
    %36 = tpu.matmul %34, %35, %cst_19 {dimension_numbers = #tpu.dot_dimension_numbers<[1], [0], [0], [1], [0, 0, 1, 1], [], []>} : vector<2x4xf32>, vector<4x8xf32>, vector<2x8xf32> -> vector<2x8xf32>
    %c0_20 = arith.constant 0 : index
    %c0_21 = arith.constant 0 : index
    %37 = vector.load %arg7[%c0_20, %c0_21] : memref<1x8xf32, #tpu.memory_space<vmem>>, vector<1x8xf32>
    %38 = vector.broadcast %37 : vector<1x8xf32> to vector<2x8xf32>
    %39 = arith.addf %36, %38 : vector<2x8xf32>
    %cst_22 = arith.constant 0.000000e+00 : f32
    %40 = vector.broadcast %cst_22 : f32 to vector<2x8xf32>
    %41 = arith.subf %40, %39 : vector<2x8xf32>
    %42 = math.exp %41 : vector<2x8xf32>
    %cst_23 = arith.constant 1.000000e+00 : f32
    %43 = vector.broadcast %cst_23 : f32 to vector<2x8xf32>
    %44 = arith.addf %43, %42 : vector<2x8xf32>
    %cst_24 = arith.constant 1.000000e+00 : f32
    %45 = vector.broadcast %cst_24 : f32 to vector<2x8xf32>
    %46 = arith.divf %45, %44 : vector<2x8xf32>
    %c0_25 = arith.constant 0 : index
    %c0_26 = arith.constant 0 : index
    %47 = vector.load %arg8[%c0_25, %c0_26] : memref<2x8xf32, #tpu.memory_space<vmem>>, vector<2x8xf32>
    tpu.vector_store %arg8[%c0_25, %c0_26], %46 {strides = array<i32>} : memref<2x8xf32, #tpu.memory_space<vmem>>, vector<2x8xf32>,
    return
  }
  func.func @transform_0(%arg0: i32) -> (i32, i32, i32) {
    %c0_i32 = arith.constant 0 : i32
    %c0_i32_0 = arith.constant 0 : i32
    %c0_i32_1 = arith.constant 0 : i32
    return %arg0, %c0_i32, %c0_i32_0 : i32, i32, i32
  }
  func.func @transform_1(%arg0: i32) -> (i32, i32) {
    %c0_i32 = arith.constant 0 : i32
    %c0_i32_0 = arith.constant 0 : i32
    %c0_i32_1 = arith.constant 0 : i32
    return %c0_i32, %c0_i32_0 : i32, i32
  }
  func.func @transform_2(%arg0: i32) -> (i32, i32) {
    %c0_i32 = arith.constant 0 : i32
    %c0_i32_0 = arith.constant 0 : i32
    %c0_i32_1 = arith.constant 0 : i32
    return %c0_i32, %c0_i32_0 : i32, i32
  }
  func.func @transform_3(%arg0: i32) -> (i32, i32) {
    %c0_i32 = arith.constant 0 : i32
    %c0_i32_0 = arith.constant 0 : i32
    %c0_i32_1 = arith.constant 0 : i32
    return %c0_i32, %c0_i32_0 : i32, i32
  }
  func.func @transform_4(%arg0: i32) -> (i32, i32) {
    %c0_i32 = arith.constant 0 : i32
    %c0_i32_0 = arith.constant 0 : i32
    %c0_i32_1 = arith.constant 0 : i32
    return %c0_i32, %c0_i32_0 : i32, i32
  }
  func.func @transform_5(%arg0: i32) -> (i32, i32) {
    %c0_i32 = arith.constant 0 : i32
    %c0_i32_0 = arith.constant 0 : i32
    %c0_i32_1 = arith.constant 0 : i32
    return %c0_i32, %c0_i32_0 : i32, i32
  }
  func.func @transform_6(%arg0: i32) -> (i32, i32) {
    %c0_i32 = arith.constant 0 : i32
    %c0_i32_0 = arith.constant 0 : i32
    %c0_i32_1 = arith.constant 0 : i32
    return %c0_i32, %c0_i32_0 : i32, i32
  }
  func.func @transform_7(%arg0: i32) -> (i32, i32) {
    %c0_i32 = arith.constant 0 : i32
    %c0_i32_0 = arith.constant 0 : i32
    return %arg0, %c0_i32 : i32, i32
  }
}

</mosaic_0001>

<llo_original>
// kernel: tpu_custom_call.1
$region0: #{tpu_custom_call.1}
  #allocation0 [shape = 'u32[]', space=smem, size = 0x4, offset = 0x4, fixed_abs, tag = 'smem constant byte address 0x4 - core index']
  #allocation1 [shape = 'u32[144,128]{1,0:T(1,128)}', space=vmem, size = 0x12000, scoped, tag = 'internal scratch']
  #allocation2 [shape = 'f32[1,1]{1,0:T(1,128)S(1)}', space=vmem, size = 0x200, scoped, tag = 'scoped memory for tpu_custom_call.1']
  %s0 = inlined_call_operand.hbm [shape: f32[2,4,16], index: 0, kind: input, shape index: {}]
  %s1 = inlined_call_operand.vmem [shape: f32[4,1], index: 1, kind: input, shape index: {}]
  %s2 = inlined_call_operand.<no memory space> [shape: f32[1,1], index: 2, kind: input, shape index: {}]
  %s3 = inlined_call_operand.vmem [shape: f32[4,4], index: 3, kind: input, shape index: {}]
  %s4 = inlined_call_operand.vmem [shape: f32[1,4], index: 4, kind: input, shape index: {}]
  %s5 = inlined_call_operand.vmem [shape: f32[4,8], index: 5, kind: input, shape index: {}]
  %s6 = inlined_call_operand.vmem [shape: f32[1,8], index: 6, kind: input, shape index: {}]
  %s7 = inlined_call_operand.hbm [shape: f32[2,8], index: 7, kind: output, shape index: {}]
  %s8 = sld [smem:[#allocation0]]
  $region42: #{tpu_custom_call.1} parent=0
    _
  %s10 = ssub.s32 1, %s8
  %s11 = scalar_select 0, %s10, %s8
  %v12 = vstv %s2
  %13 = vst [vmem:[#allocation2] sm:$0x1] %v12
  $region1: #{tpu_custom_call.1} parent=0
    #allocation3 [shape = 'u8[4096]{0}', space=vmem, size = 0x1000, scoped, tag = 'input window, operand 0, single buffered']
    #allocation4 [shape = 's32[1]{0}', space=sflag, size = 0x4, scoped, tag = 'scoped memory for tpu_custom_call.1']
    #allocation5 [shape = 's32[1]{0}', space=sflag, size = 0x4, scoped, tag = 'scoped memory for tpu_custom_call.1']
    #allocation6 [shape = 'u8[1024]{0}', space=vmem, size = 0x400, scoped, tag = 'output window, operand 0, single buffered']
    %14 = vsyncpa [#allocation4], 0
    %15 = vsyncpa [#allocation5], 0
    // Predicated region
    $region2: #{tpu_custom_call.1} parent=1 // pred_check
      _
    $region3: #{tpu_custom_call.1} parent=1 // pred_check_branch
      %17 = sbr.rel (0) target = $region5
    $region4: #{tpu_custom_call.1} parent=1 // pred_region
      %s19 = ssub.s32 128, 128
      %20 = vsyncadd [#allocation4], %s19
      %s21 = sshll.u32 [#allocation3], 4
      %s22 = int_to_ptr.vmem [resolvable:$true] %s21
      %27 = dma.hbm_to_vmem [thread:$0]  %s0, 128, %s22, [#allocation4], 64, 64, 4
    $region5: #{tpu_custom_call.1} parent=1 // pred_fallthru
      _
    // Predicated region
    $region6: #{tpu_custom_call.1} parent=1 // pred_check
      _
    $region7: #{tpu_custom_call.1} parent=1 // pred_check_branch
      %29 = sbr.rel (0) target = $region9
    $region8: #{tpu_custom_call.1} parent=1 // pred_region
      _
    $region9: #{tpu_custom_call.1} parent=1 // pred_fallthru
      _
    // Predicated region
    $region10: #{tpu_custom_call.1} parent=1 // pred_check
      _
    $region11: #{tpu_custom_call.1} parent=1 // pred_check_branch
      %31 = sbr.rel (0) target = $region13
    $region12: #{tpu_custom_call.1} parent=1 // pred_region
      _
    $region13: #{tpu_custom_call.1} parent=1 // pred_fallthru
      _
    // Predicated region
    $region14: #{tpu_custom_call.1} parent=1 // pred_check
      _
    $region15: #{tpu_custom_call.1} parent=1 // pred_check_branch
      %33 = sbr.rel (0) target = $region17
    $region16: #{tpu_custom_call.1} parent=1 // pred_region
      _
    $region17: #{tpu_custom_call.1} parent=1 // pred_fallthru
      _
    // Predicated region
    $region18: #{tpu_custom_call.1} parent=1 // pred_check
      _
    $region19: #{tpu_custom_call.1} parent=1 // pred_check_branch
      %35 = sbr.rel (0) target = $region21
    $region20: #{tpu_custom_call.1} parent=1 // pred_region
      _
    $region21: #{tpu_custom_call.1} parent=1 // pred_fallthru
      _
    // Predicated region
    $region22: #{tpu_custom_call.1} parent=1 // pred_check
      _
    $region23: #{tpu_custom_call.1} parent=1 // pred_check_branch
      %37 = sbr.rel (0) target = $region25
    $region24: #{tpu_custom_call.1} parent=1 // pred_region
      _
    $region25: #{tpu_custom_call.1} parent=1 // pred_fallthru
      _
    // Predicated region
    $region26: #{tpu_custom_call.1} parent=1 // pred_check
      _
    $region27: #{tpu_custom_call.1} parent=1 // pred_check_branch
      %39 = sbr.rel (0) target = $region29
    $region28: #{tpu_custom_call.1} parent=1 // pred_region
      _
    $region29: #{tpu_custom_call.1} parent=1 // pred_fallthru
      _
    // Predicated region
    $region30: #{tpu_custom_call.1} parent=1 // pred_check
      _
    $region31: #{tpu_custom_call.1} parent=1 // pred_check_branch
      %41 = sbr.rel (0) target = $region33
    $region32: #{tpu_custom_call.1} parent=1 // pred_region
      %42 = dma.done [#allocation4], 128
    $region33: #{tpu_custom_call.1} parent=1 // pred_fallthru
      _
    %v43 = vld [vmem:[#allocation3] sm:$0xf]
    %v44 = vld [vmem:[#allocation3 + $0x4] sm:$0xf]
    %v45 = vld [vmem:[%s1] sm:$0xf]
    %47 = vset.pattern.permute.xlu0 0
    %48 = vperm.xlu0 %47, %v45
    %v49 = vpop.permute.xlu0 %48
    %v51 = vmul.f32 %v43, %v49
    %v52 = vmul.f32 %v44, %v49
    %vm53 = vcmask 125952
    %v54 = vsel %vm53, %v51, 0.0
    %v55 = vrot.slane %v54, 4
    %v56 = vadd.f32 %v54, %v55
    %v57 = vrot.slane %v56, 2
    %v58 = vadd.f32 %v56, %v57
    %v59 = vrot.slane %v58, 1
    %v60 = vadd.f32 %v58, %v59
    %v61 = vsel %vm53, %v52, 0.0
    %v62 = vrot.slane %v61, 4
    %v63 = vadd.f32 %v61, %v62
    %v64 = vrot.slane %v63, 2
    %v65 = vadd.f32 %v63, %v64
    %v66 = vrot.slane %v65, 1
    %v67 = vadd.f32 %v65, %v66
    %v68 = vld [vmem:[#allocation2] sm:$0x1]
    %v70 = vlaneseq
    %v71 = vshrl.u32 %v70, 7
    %v72 = vsub.s32 0, %v71
    %v73 = vrot.slane %v68, %v72
    %74 = vset.pattern.permute.xlu0 0
    %75 = vperm.xlu0 %74, %v73
    %v76 = vpop.permute.xlu0 %75
    %v78 = vadd.f32 %v60, %v76
    %v79 = vadd.f32 %v67, %v76
    %vm82 = vcmask 1041409
    %v83 = vsel %vm82, %v79, %v78
    %vm85 = vcmask 123904
    %v86 = vsel %vm85, %v83, -inf
    %87 = vmax.xlane.f32.xlu0 %v86
    %v88 = vpop.xlane.xlu0 %87
    %v90 = vrot.slane %v88, 1
    %v93 = vsub.f32 %v78, %v88
    %v94 = vsub.f32 %v79, %v90
    %v95 = vmul.f32 %v93, 1.442695
    %v96 = vpow.pop %v95
    %v97 = vmul.f32 %v94, 1.442695
    %v98 = vpow.pop %v97
    %v101 = vrot.slane %v98, 7
    %v102 = vsel %vm82, %v101, %v96
    %v104 = vsel %vm85, %v102, 0.0
    %105 = vadd.xlane.f32.xlu0 %v104
    %v106 = vpop.xlane.xlu0 %105
    %v108 = vrot.slane %v106, 1
    %v111 = vrcp.pop %v106
    %v112 = vmul.f32 %v96, %v111
    %v113 = vrcp.pop %v108
    %v114 = vmul.f32 %v98, %v113
    %v115 = vlaneseq
    %v116 = vshrl.u32 %v115, 7
    %v117 = vsub.s32 0, %v116
    %v118 = vrot.slane %v112, %v117
    %v119 = vlaneseq
    %v120 = vshrl.u32 %v119, 7
    %v121 = vsub.s32 0, %v120
    %v122 = vrot.slane %v114, %v121
    %v123 = vmul.f32 %v43, %v118
    %v124 = vmul.f32 %v44, %v122
    %v125 = vsel %vm53, %v123, 0.0
    %126 = vadd.xlane.f32.xlu0 %v125
    %v127 = vpop.xlane.xlu0 %126
    %v128 = vsel %vm53, %v124, 0.0
    %129 = vadd.xlane.f32.xlu0 %v128
    %v130 = vpop.xlane.xlu0 %129
    %v131 = vld [vmem:[%s3] sm:$0xf]
    %v132 = vld [vmem:[%s4] sm:$0x1]
    %v134 = vlaneseq
    %v135 = vshrl.u32 %v134, 7
    %v136 = vsub.s32 0, %v135
    %v137 = vrot.slane %v132, %v136
    %v141 = vlaneseq
    %v142 = vand.u32 %v141, 127
    %v143 = vlaneseq
    %v144 = vshrl.u32 %v143, 7
    %v145 = vsub.s32 %v142, %v144
    %v146 = vrot.slane %v127, %v145
    %v147 = vlaneseq
    %v148 = vshrl.u32 %v147, 7
    %v149 = vsub.s32 %v142, %v148
    %v150 = vrot.slane %v130, %v149
    %v151 = vsel %vm82, %v150, %v146
    %vm152 = vcmask 31744
    %v153 = vsel %vm152, %v151, 0
    %vm155 = vcmask 1043456
    %v157 = vsel %vm155, %v131, 0
    %159 = vmatprep.subr.mxu0 0.0
    %160 = vmatpush1.msra.mxu0 0.0
    %161 = vmatprep.subr.mxu0 0.0
    %162 = vmatpush1.msra.mxu0 0.0
    %163 = vmatprep.subr.mxu0 0.0
    %164 = vmatpush1.msra.mxu0 0.0
    %165 = vmatprep.subr.mxu0 0.0
    %166 = vmatpush1.msra.mxu0 0.0
    %167 = vmatprep.subr.mxu0 0.0
    %168 = vmatpush1.msra.mxu0 0.0
    %169 = vmatprep.subr.mxu0 0.0
    %170 = vmatpush1.msra.mxu0 0.0
    %171 = vmatprep.subr.mxu0 0.0
    %172 = vmatpush1.msra.mxu0 0.0
    %173 = vmatprep.subr.mxu0 0.0
    %174 = vmatpush1.msra.mxu0 0.0
    %175 = vmatprep.subr.mxu0 0.0
    %176 = vmatpush1.msra.mxu0 0.0
    %177 = vmatprep.subr.mxu0 0.0
    %178 = vmatpush1.msra.mxu0 0.0
    %179 = vmatprep.subr.mxu0 0.0
    %180 = vmatpush1.msra.mxu0 0.0
    %181 = vmatprep.subr.mxu0 0.0
    %182 = vmatpush1.msra.mxu0 0.0
    %183 = vmatprep.subr.mxu0 0.0
    %184 = vmatpush1.msra.mxu0 0.0
    %185 = vmatprep.subr.mxu0 0.0
    %186 = vmatpush1.msra.mxu0 0.0
    %187 = vmatprep.subr.mxu0 0.0
    %188 = vmatpush1.msra.mxu0 0.0
    %189 = vmatprep.subr.mxu0 0.0
    %190 = vmatpush1.msra.mxu0 %v157
    %191 = vmatprep.subr.mxu0 0.0
    %192 = vmatpush2.msra.mxu0 0.0
    %193 = vmatprep.subr.mxu0 0.0
    %194 = vmatpush2.msra.mxu0 0.0
    %195 = vmatprep.subr.mxu0 0.0
    %196 = vmatpush2.msra.mxu0 0.0
    %197 = vmatprep.subr.mxu0 0.0
    %198 = vmatpush2.msra.mxu0 0.0
    %199 = vmatprep.subr.mxu0 0.0
    %200 = vmatpush2.msra.mxu0 0.0
    %201 = vmatprep.subr.mxu0 0.0
    %202 = vmatpush2.msra.mxu0 0.0
    %203 = vmatprep.subr.mxu0 0.0
    %204 = vmatpush2.msra.mxu0 0.0
    %205 = vmatprep.subr.mxu0 0.0
    %206 = vmatpush2.msra.mxu0 0.0
    %207 = vmatprep.subr.mxu0 0.0
    %208 = vmatpush2.msra.mxu0 0.0
    %209 = vmatprep.subr.mxu0 0.0
    %210 = vmatpush2.msra.mxu0 0.0
    %211 = vmatprep.subr.mxu0 0.0
    %212 = vmatpush2.msra.mxu0 0.0
    %213 = vmatprep.subr.mxu0 0.0
    %214 = vmatpush2.msra.mxu0 0.0
    %215 = vmatprep.subr.mxu0 0.0
    %216 = vmatpush2.msra.mxu0 0.0
    %217 = vmatprep.subr.mxu0 0.0
    %218 = vmatpush2.msra.mxu0 0.0
    %219 = vmatprep.subr.mxu0 0.0
    %220 = vmatpush2.msra.mxu0 0.0
    %221 = vmatprep.subr.mxu0 0.0
    %222 = vmatpush2.msra.mxu0 0.0
    %223 = vmatprep.mubr.f32.mxu0 0.0
    %224 = vmatmul.mubr.f32.gmra.mxu0 %v153
    %v225 = vpop.f32.mrf.mxu0
    %v226 = vadd.f32 %v137, %v225
    %v227 = vpop.f32.mrf.mxu0
    %228 = vdwg.mxu0
    %v229 = vsub.f32 0.0, %v226
    %v230 = vmul.f32 %v229, 1.442695
    %v231 = vpow.pop %v230
    %v232 = vadd.f32 %v231, 1.0
    %v233 = vrcp.pop %v232
    %v234 = vmul.f32 1.0, %v233
    %v235 = vmul.f32 %v226, %v234
    %v236 = vld [vmem:[%s5] sm:$0xf]
    %v237 = vld [vmem:[%s6] sm:$0x1]
    %v239 = vlaneseq
    %v240 = vshrl.u32 %v239, 7
    %v241 = vsub.s32 0, %v240
    %v242 = vrot.slane %v237, %v241
    %v245 = vsel %vm152, %v235, 0
    %v248 = vsel %vm155, %v236, 0
    %250 = vmatprep.subr.mxu0 0.0
    %251 = vmatpush1.msra.mxu0 0.0
    %252 = vmatprep.subr.mxu0 0.0
    %253 = vmatpush1.msra.mxu0 0.0
    %254 = vmatprep.subr.mxu0 0.0
    %255 = vmatpush1.msra.mxu0 0.0
    %256 = vmatprep.subr.mxu0 0.0
    %257 = vmatpush1.msra.mxu0 0.0
    %258 = vmatprep.subr.mxu0 0.0
    %259 = vmatpush1.msra.mxu0 0.0
    %260 = vmatprep.subr.mxu0 0.0
    %261 = vmatpush1.msra.mxu0 0.0
    %262 = vmatprep.subr.mxu0 0.0
    %263 = vmatpush1.msra.mxu0 0.0
    %264 = vmatprep.subr.mxu0 0.0
    %265 = vmatpush1.msra.mxu0 0.0
    %266 = vmatprep.subr.mxu0 0.0
    %267 = vmatpush1.msra.mxu0 0.0
    %268 = vmatprep.subr.mxu0 0.0
    %269 = vmatpush1.msra.mxu0 0.0
    %270 = vmatprep.subr.mxu0 0.0
    %271 = vmatpush1.msra.mxu0 0.0
    %272 = vmatprep.subr.mxu0 0.0
    %273 = vmatpush1.msra.mxu0 0.0
    %274 = vmatprep.subr.mxu0 0.0
    %275 = vmatpush1.msra.mxu0 0.0
    %276 = vmatprep.subr.mxu0 0.0
    %277 = vmatpush1.msra.mxu0 0.0
    %278 = vmatprep.subr.mxu0 0.0
    %279 = vmatpush1.msra.mxu0 0.0
    %280 = vmatprep.subr.mxu0 0.0
    %281 = vmatpush1.msra.mxu0 %v248
    %282 = vmatprep.subr.mxu0 0.0
    %283 = vmatpush2.msra.mxu0 0.0
    %284 = vmatprep.subr.mxu0 0.0
    %285 = vmatpush2.msra.mxu0 0.0
    %286 = vmatprep.subr.mxu0 0.0
    %287 = vmatpush2.msra.mxu0 0.0
    %288 = vmatprep.subr.mxu0 0.0
    %289 = vmatpush2.msra.mxu0 0.0
    %290 = vmatprep.subr.mxu0 0.0
    %291 = vmatpush2.msra.mxu0 0.0
    %292 = vmatprep.subr.mxu0 0.0
    %293 = vmatpush2.msra.mxu0 0.0
    %294 = vmatprep.subr.mxu0 0.0
    %295 = vmatpush2.msra.mxu0 0.0
    %296 = vmatprep.subr.mxu0 0.0
    %297 = vmatpush2.msra.mxu0 0.0
    %298 = vmatprep.subr.mxu0 0.0
    %299 = vmatpush2.msra.mxu0 0.0
    %300 = vmatprep.subr.mxu0 0.0
    %301 = vmatpush2.msra.mxu0 0.0
    %302 = vmatprep.subr.mxu0 0.0
    %303 = vmatpush2.msra.mxu0 0.0
    %304 = vmatprep.subr.mxu0 0.0
    %305 = vmatpush2.msra.mxu0 0.0
    %306 = vmatprep.subr.mxu0 0.0
    %307 = vmatpush2.msra.mxu0 0.0
    %308 = vmatprep.subr.mxu0 0.0
    %309 = vmatpush2.msra.mxu0 0.0
    %310 = vmatprep.subr.mxu0 0.0
    %311 = vmatpush2.msra.mxu0 0.0
    %312 = vmatprep.subr.mxu0 0.0
    %313 = vmatpush2.msra.mxu0 0.0
    %314 = vmatprep.mubr.f32.mxu0 0.0
    %315 = vmatmul.mubr.f32.gmra.mxu0 %v245
    %v316 = vpop.f32.mrf.mxu0
    %v317 = vadd.f32 %v242, %v316
    %v318 = vpop.f32.mrf.mxu0
    %319 = vdwg.mxu0
    %v320 = vsub.f32 0.0, %v317
    %v321 = vmul.f32 %v320, 1.442695
    %v322 = vpow.pop %v321
    %v323 = vadd.f32 %v322, 1.0
    %v324 = vrcp.pop %v323
    %v325 = vmul.f32 1.0, %v324
    %vm326 = vcmask 58368
    %327 = vst.msk [vmem:[#allocation6] sm:$0x3] %vm326, %v325
    // Predicated region
    $region34: #{tpu_custom_call.1} parent=1 // pred_check
      _
    $region35: #{tpu_custom_call.1} parent=1 // pred_check_branch
      %329 = sbr.rel (0) target = $region37
    $region36: #{tpu_custom_call.1} parent=1 // pred_region
      %s331 = ssub.s32 32, 32
      %332 = vsyncadd [#allocation5], %s331
      %s334 = sshll.u32 [#allocation6], 4
      %s335 = int_to_ptr.vmem [resolvable:$true] %s334
      %337 = dma.vmem_to_hbm [thread:$0]  %s335, 32, %s7, [#allocation5]
    $region37: #{tpu_custom_call.1} parent=1 // pred_fallthru
      _
    // Predicated region
    $region38: #{tpu_custom_call.1} parent=1 // pred_check
      _
    $region39: #{tpu_custom_call.1} parent=1 // pred_check_branch
      %339 = sbr.rel (0) target = $region41
    $region40: #{tpu_custom_call.1} parent=1 // pred_region
      %340 = dma.done [#allocation5], 32
    $region41: #{tpu_custom_call.1} parent=1 // pred_fallthru
      _
    %341 = vsyncpa [#allocation4], 1
    %342 = vsyncpa [#allocation5], 1

</llo_original>
